<compile_context>
chip_gen: v7x
topology: tpu7x:2x2x1
jax: 0.10.0
libtpu: 0.0.40
codegen_flags: <defaults>
</compile_context>

<pallas_src>
import functools

import jax
import jax.numpy as jnp
from jax.experimental import pallas as pl
from jax.experimental.pallas import tpu as pltpu


def _l2_masked_mean_kernel(x_ref, y_ref, m_ref, sq_ref, nm_ref, *,
                           tm, tn, blocks_per_core, n_blocks, rows,
                           has_tail, need_gate):
    c = pl.program_id(0)          # core / parallel axis
    j = pl.program_id(1)          # reduction axis

    # Zero this core's resident accumulator tiles at the start of its sweep.
    @pl.when(j == 0)
    def _():
        sq_ref[...] = jnp.zeros_like(sq_ref)
        nm_ref[...] = jnp.zeros_like(nm_ref)

    logical_block = c * blocks_per_core + j

    def accumulate(apply_tail_mask):
        # Upcast after load (inputs may be bf16/int8; v5e VPU has no bf16).
        x = x_ref[...].astype(jnp.float32)
        y = y_ref[...].astype(jnp.float32)
        masked = 1.0 - m_ref[...].astype(jnp.float32)

        # For a {0,1} mask:  (x*masked - y*masked)^2 == ((x - y)*masked)^2
        d = (x - y) * masked
        sq = d * d
        nm = masked

        if apply_tail_mask:
            # Only traced for the (single) overhanging tail block: kills the
            # garbage rows the clamped last block reads past `rows`.  Padded
            # rows below `rows` are already neutral because the mask was
            # padded with 1 (masked == 0).
            row0 = logical_block * tm
            row_ids = row0 + jax.lax.broadcasted_iota(jnp.int32, (tm, tn), 0)
            valid = row_ids < rows
            sq = jnp.where(valid, sq, 0.0)
            nm = jnp.where(valid, nm, 0.0)

        # vreg-shaped partial sums: (tm,128) -> (tm//8, 8, 128) is
        # tile-aligned (free reshape); the axis-0 sum is pure VPU vreg adds.
        # The expensive cross-lane/sublane reduce is a wrapper epilogue.
        sq_ref[...] += jnp.sum(sq.reshape(tm // 8, 8, tn), axis=0)
        nm_ref[...] += jnp.sum(nm.reshape(tm // 8, 8, tn), axis=0)

    n_full = n_blocks - 1 if has_tail else n_blocks

    if need_gate:
        # Steady-state full blocks; skips clamped duplicate blocks and the
        # tail block (which gets its own masked path below).
        @pl.when(logical_block < n_full)
        def _():
            accumulate(False)
    else:
        # No tail, no duplicates: completely unconditional common path.
        accumulate(False)

    if has_tail:
        @pl.when(logical_block == n_blocks - 1)
        def _():
            accumulate(True)


def _tpu_defaults():
    """(num_cores, target_block_bytes) — generation-aware, best effort."""
    num_cores = 1
    target_block_bytes = 1 << 20           # 1 MiB blocks: ~85%+ of HBM roofline
    try:
        kind = jax.devices()[0].device_kind.lower()
        if "v7" in kind:                    # 2 TensorCores, faster HBM
            num_cores = 2
            target_block_bytes = 2 << 20
    except Exception:
        pass
    return num_cores, target_block_bytes


def l2_loss_masked_mean(x, y, mask, *, num_cores=None, target_block_bytes=None):
    """Pallas implementation of L2LossMaskedMean.forward (reduction='sum')."""
    tn = 128

    if mask.dtype == jnp.bool_:
        mask = mask.astype(jnp.int8)        # 1-byte view; keeps HBM traffic low

    auto_cores, auto_bytes = _tpu_defaults()
    if num_cores is None:
        num_cores = auto_cores
    if target_block_bytes is None:
        target_block_bytes = auto_bytes

    xf = x.reshape(-1)
    yf = y.reshape(-1)
    mf = mask.reshape(-1)
    n = xf.shape[0]

    # Packed-sublane multiple: 8 rows/vreg for 4-byte dtypes, 16 for 2-byte,
    # 32 for 1-byte.  Use the max over all inputs so no array needs relayout.
    def _sub_mult(dt):
        return 32 // jnp.dtype(dt).itemsize
    sublane_mult = max(_sub_mult(a.dtype) for a in (xf, yf, mf))

    # Pad only up to the next multiple of sublane_mult*128 so the flat array
    # reshapes to a lane-dense (rows, 128) slab.  The mask is padded with 1 so
    # padded elements contribute 0 to both sums (do NOT change this constant).
    chunk = sublane_mult * tn
    pad = (-n) % chunk
    if pad:
        xf = jnp.pad(xf, (0, pad))
        yf = jnp.pad(yf, (0, pad))
        mf = jnp.pad(mf, (0, pad), constant_values=1)

    rows = (n + pad) // tn
    x2 = xf.reshape(rows, tn)
    y2 = yf.reshape(rows, tn)
    m2 = mf.reshape(rows, tn)

    # Tile rows sized in bytes: largest input block ~= target_block_bytes.
    max_itemsize = max(jnp.dtype(a.dtype).itemsize for a in (x2, y2, m2))
    tm = (target_block_bytes // (tn * max_itemsize)) // sublane_mult * sublane_mult
    tm = max(sublane_mult, tm)
    tm = min(tm, rows)                       # rows, tm multiples of sublane_mult

    n_blocks = pl.cdiv(rows, tm)
    blocks_per_core = pl.cdiv(n_blocks, num_cores)
    has_tail = (rows % tm) != 0
    need_gate = has_tail or (num_cores * blocks_per_core > n_blocks)

    def in_map(c, j):
        # Clamp so we never issue a fully out-of-range DMA; the clamped
        # duplicate blocks are skipped inside the kernel via pl.when.
        return (jnp.minimum(c * blocks_per_core + j, n_blocks - 1), 0)

    def out_map(c, j):
        return (c, 0)                        # resident accumulator per core

    kernel = functools.partial(
        _l2_masked_mean_kernel,
        tm=tm, tn=tn, blocks_per_core=blocks_per_core, n_blocks=n_blocks,
        rows=rows, has_tail=has_tail, need_gate=need_gate)

    sq_part, nm_part = pl.pallas_call(
        kernel,
        out_shape=(
            jax.ShapeDtypeStruct((num_cores * 8, tn), jnp.float32),
            jax.ShapeDtypeStruct((num_cores * 8, tn), jnp.float32),
        ),
        grid_spec=pltpu.PrefetchScalarGridSpec(
            num_scalar_prefetch=0,
            grid=(num_cores, blocks_per_core),
            in_specs=[
                pl.BlockSpec((tm, tn), in_map),
                pl.BlockSpec((tm, tn), in_map),
                pl.BlockSpec((tm, tn), in_map),
            ],
            out_specs=[
                pl.BlockSpec((8, tn), out_map),
                pl.BlockSpec((8, tn), out_map),
            ],
        ),
        compiler_params=pltpu.CompilerParams(
            dimension_semantics=("parallel", "arbitrary")),
    )(x2, y2, m2)

    # Tiny epilogue: full reduce of the (num_cores*8, 128) partials + divide.
    # (Divide-by-zero for an all-ones mask matches PyTorch: inf/nan.)
    return jnp.sum(sq_part) / jnp.sum(nm_part)


def _ref_loss(x, y, mask):
    xf = x.astype(jnp.float32)
    yf = y.astype(jnp.float32)
    masked = 1.0 - mask.astype(jnp.float32)
    return jnp.sum((xf * masked - yf * masked) ** 2) / jnp.sum(masked)


if __name__ == "__main__":
    key = jax.random.PRNGKey(0)
    kx, ky, km = jax.random.split(key, 3)

    # --- test 1: NCHW f32, matching the PyTorch module's usual inputs ---
    B, C, H, W = 2, 4, 16, 16
    x = jax.random.normal(kx, (B, C, H, W), dtype=jnp.float32)
    y = jax.random.normal(ky, (B, C, H, W), dtype=jnp.float32)
    mask = (jax.random.uniform(km, (B, C, H, W)) < 0.3).astype(jnp.float32)

    loss = l2_loss_masked_mean(x, y, mask)
    jax.block_until_ready(loss)
    ref = _ref_loss(x, y, mask)
    assert jnp.allclose(loss, ref, rtol=1e-5, atol=1e-5), (loss, ref)

    # --- test 2: bf16 x/y with a cheap int8 mask, odd size (pad path) ---
    k2x, k2y, k2m = jax.random.split(jax.random.PRNGKey(1), 3)
    shape2 = (3, 5, 7, 11)
    x2 = jax.random.normal(k2x, shape2, dtype=jnp.bfloat16)
    y2 = jax.random.normal(k2y, shape2, dtype=jnp.bfloat16)
    m2 = (jax.random.uniform(k2m, shape2) < 0.3).astype(jnp.int8)

    loss2 = l2_loss_masked_mean(x2, y2, m2)
    jax.block_until_ready(loss2)
    ref2 = _ref_loss(x2, y2, m2)
    assert jnp.allclose(loss2, ref2, rtol=1e-4, atol=1e-4), (loss2, ref2)

    # --- test 3: forces a tail block (rows=24, tm=16) and the parallel axis ---
    k3x, k3y, k3m = jax.random.split(jax.random.PRNGKey(2), 3)
    shape3 = (3, 32, 32)
    x3 = jax.random.normal(k3x, shape3, dtype=jnp.float32)
    y3 = jax.random.normal(k3y, shape3, dtype=jnp.float32)
    m3 = (jax.random.uniform(k3m, shape3) < 0.5).astype(jnp.float32)

    loss3 = l2_loss_masked_mean(x3, y3, m3,
                                num_cores=2, target_block_bytes=16 * 128 * 4)
    jax.block_until_ready(loss3)
    ref3 = _ref_loss(x3, y3, m3)
    assert jnp.allclose(loss3, ref3, rtol=1e-5, atol=1e-5), (loss3, ref3)

    # --- test 4: forces clamped duplicate blocks (n_blocks=3, 2 "cores") ---
    k4x, k4y, k4m = jax.random.split(jax.random.PRNGKey(3), 3)
    shape4 = (3, 4, 16, 16)
    x4 = jax.random.normal(k4x, shape4, dtype=jnp.float32)
    y4 = jax.random.normal(k4y, shape4, dtype=jnp.float32)
    m4 = (jax.random.uniform(k4m, shape4) < 0.3).astype(jnp.float32)

    loss4 = l2_loss_masked_mean(x4, y4, m4,
                                num_cores=2, target_block_bytes=8 * 128 * 4)
    jax.block_until_ready(loss4)
    ref4 = _ref_loss(x4, y4, m4)
    assert jnp.allclose(loss4, ref4, rtol=1e-5, atol=1e-5), (loss4, ref4)

    print("KERNEL_OK")
</pallas_src>

<mosaic_0001>
module attributes {stable_mosaic.version = 11 : i64} {
  func.func @_l2_masked_mean_kernel(%arg0: i32, %arg1: i32, %arg2: memref<16x128xf32, #tpu.memory_space<vmem>>, %arg3: memref<16x128xf32, #tpu.memory_space<vmem>>, %arg4: memref<16x128xf32, #tpu.memory_space<vmem>>, %arg5: memref<8x128xf32, #tpu.memory_space<vmem>>, %arg6: memref<8x128xf32, #tpu.memory_space<vmem>>) attributes {dimension_semantics = [#tpu.dimension_semantics<parallel>, #tpu.dimension_semantics<arbitrary>], iteration_bounds = array<i64: 1, 1>, scalar_prefetch = 0 : i64, scratch_operands = 0 : i64, tpu.core_type = #tpu.core_type<tc>, window_params = [{transform_indices = @transform_0, window_bounds = array<i64: 16, 128>}, {transform_indices = @transform_1, window_bounds = array<i64: 16, 128>}, {transform_indices = @transform_2, window_bounds = array<i64: 16, 128>}, {transform_indices = @transform_3, window_bounds = array<i64: 8, 128>}, {transform_indices = @transform_4, window_bounds = array<i64: 8, 128>}]} {
    %c0_i32 = arith.constant 0 : i32
    %0 = arith.cmpi eq, %arg1, %c0_i32 : i32
    %1 = arith.extui %0 : i1 to i32
    %c0_i32_0 = arith.constant 0 : i32
    %2 = arith.cmpi ne, %1, %c0_i32_0 : i32
    scf.if %2 {
      %cst_16 = arith.constant 0.000000e+00 : f32
      %21 = vector.broadcast %cst_16 : f32 to vector<8x128xf32>
      %c0_17 = arith.constant 0 : index
      %c0_18 = arith.constant 0 : index
      %22 = vector.load %arg5[%c0_17, %c0_18] : memref<8x128xf32, #tpu.memory_space<vmem>>, vector<8x128xf32>
      tpu.vector_store %arg5[%c0_17, %c0_18], %21 {strides = array<i32>} : memref<8x128xf32, #tpu.memory_space<vmem>>, vector<8x128xf32>,
      %cst_19 = arith.constant 0.000000e+00 : f32
      %23 = vector.broadcast %cst_19 : f32 to vector<8x128xf32>
      %c0_20 = arith.constant 0 : index
      %c0_21 = arith.constant 0 : index
      %24 = vector.load %arg6[%c0_20, %c0_21] : memref<8x128xf32, #tpu.memory_space<vmem>>, vector<8x128xf32>
      tpu.vector_store %arg6[%c0_20, %c0_21], %23 {strides = array<i32>} : memref<8x128xf32, #tpu.memory_space<vmem>>, vector<8x128xf32>,
    } else {
    }
    %c0 = arith.constant 0 : index
    %c0_1 = arith.constant 0 : index
    %3 = vector.load %arg2[%c0, %c0_1] : memref<16x128xf32, #tpu.memory_space<vmem>>, vector<16x128xf32>
    %c0_2 = arith.constant 0 : index
    %c0_3 = arith.constant 0 : index
    %4 = vector.load %arg3[%c0_2, %c0_3] : memref<16x128xf32, #tpu.memory_space<vmem>>, vector<16x128xf32>
    %c0_4 = arith.constant 0 : index
    %c0_5 = arith.constant 0 : index
    %5 = vector.load %arg4[%c0_4, %c0_5] : memref<16x128xf32, #tpu.memory_space<vmem>>, vector<16x128xf32>
    %cst = arith.constant 1.000000e+00 : f32
    %6 = vector.broadcast %cst : f32 to vector<16x128xf32>
    %7 = arith.subf %6, %5 : vector<16x128xf32>
    %8 = arith.subf %3, %4 : vector<16x128xf32>
    %9 = arith.mulf %8, %7 : vector<16x128xf32>
    %10 = arith.mulf %9, %9 : vector<16x128xf32>
    %c0_6 = arith.constant 0 : index
    %c0_7 = arith.constant 0 : index
    %11 = vector.load %arg5[%c0_6, %c0_7] : memref<8x128xf32, #tpu.memory_space<vmem>>, vector<8x128xf32>
    %12 = vector.shape_cast %10 : vector<16x128xf32> to vector<2x8x128xf32>
    %cst_8 = arith.constant dense<0.000000e+00> : vector<8x128xf32>
    %13 = vector.multi_reduction <add>, %12, %cst_8 [0] : vector<2x8x128xf32> to vector<8x128xf32>
    %14 = arith.addf %11, %13 : vector<8x128xf32>
    %c0_9 = arith.constant 0 : index
    %c0_10 = arith.constant 0 : index
    %15 = vector.load %arg5[%c0_9, %c0_10] : memref<8x128xf32, #tpu.memory_space<vmem>>, vector<8x128xf32>
    tpu.vector_store %arg5[%c0_9, %c0_10], %14 {strides = array<i32>} : memref<8x128xf32, #tpu.memory_space<vmem>>, vector<8x128xf32>,
    %c0_11 = arith.constant 0 : index
    %c0_12 = arith.constant 0 : index
    %16 = vector.load %arg6[%c0_11, %c0_12] : memref<8x128xf32, #tpu.memory_space<vmem>>, vector<8x128xf32>
    %17 = vector.shape_cast %7 : vector<16x128xf32> to vector<2x8x128xf32>
    %cst_13 = arith.constant dense<0.000000e+00> : vector<8x128xf32>
    %18 = vector.multi_reduction <add>, %17, %cst_13 [0] : vector<2x8x128xf32> to vector<8x128xf32>
    %19 = arith.addf %16, %18 : vector<8x128xf32>
    %c0_14 = arith.constant 0 : index
    %c0_15 = arith.constant 0 : index
    %20 = vector.load %arg6[%c0_14, %c0_15] : memref<8x128xf32, #tpu.memory_space<vmem>>, vector<8x128xf32>
    tpu.vector_store %arg6[%c0_14, %c0_15], %19 {strides = array<i32>} : memref<8x128xf32, #tpu.memory_space<vmem>>, vector<8x128xf32>,
    return
  }
  func.func @transform_0(%arg0: i32, %arg1: i32) -> (i32, i32) {
    %c1_i32 = arith.constant 1 : i32
    %0 = arith.muli %arg0, %c1_i32 : i32
    %1 = arith.addi %0, %arg1 : i32
    %c0_i32 = arith.constant 0 : i32
    %2 = arith.minsi %1, %c0_i32 : i32
    %c0_i32_0 = arith.constant 0 : i32
    %c0_i32_1 = arith.constant 0 : i32
    return %2, %c0_i32_0 : i32, i32
  }
  func.func @transform_1(%arg0: i32, %arg1: i32) -> (i32, i32) {
    %c1_i32 = arith.constant 1 : i32
    %0 = arith.muli %arg0, %c1_i32 : i32
    %1 = arith.addi %0, %arg1 : i32
    %c0_i32 = arith.constant 0 : i32
    %2 = arith.minsi %1, %c0_i32 : i32
    %c0_i32_0 = arith.constant 0 : i32
    %c0_i32_1 = arith.constant 0 : i32
    return %2, %c0_i32_0 : i32, i32
  }
  func.func @transform_2(%arg0: i32, %arg1: i32) -> (i32, i32) {
    %c1_i32 = arith.constant 1 : i32
    %0 = arith.muli %arg0, %c1_i32 : i32
    %1 = arith.addi %0, %arg1 : i32
    %c0_i32 = arith.constant 0 : i32
    %2 = arith.minsi %1, %c0_i32 : i32
    %c0_i32_0 = arith.constant 0 : i32
    %c0_i32_1 = arith.constant 0 : i32
    return %2, %c0_i32_0 : i32, i32
  }
  func.func @transform_3(%arg0: i32, %arg1: i32) -> (i32, i32) {
    %c0_i32 = arith.constant 0 : i32
    %c0_i32_0 = arith.constant 0 : i32
    return %arg0, %c0_i32 : i32, i32
  }
  func.func @transform_4(%arg0: i32, %arg1: i32) -> (i32, i32) {
    %c0_i32 = arith.constant 0 : i32
    %c0_i32_0 = arith.constant 0 : i32
    return %arg0, %c0_i32 : i32, i32
  }
}

</mosaic_0001>

<llo_original>
// kernel: tpu_custom_call.1
$region0: #{tpu_custom_call.1}
  #allocation0 [shape = 'u32[]', space=smem, size = 0x4, offset = 0x4, fixed_abs, tag = 'smem constant byte address 0x4 - core index']
  #allocation1 [shape = 'u32[144,128]{1,0:T(1,128)}', space=vmem, size = 0x12000, scoped, tag = 'internal scratch']
  %s0 = inlined_call_operand.hbm [shape: f32[16,128], index: 0, kind: input, shape index: {}]
  %s1 = inlined_call_operand.hbm [shape: f32[16,128], index: 1, kind: input, shape index: {}]
  %s2 = inlined_call_operand.hbm [shape: f32[16,128], index: 2, kind: input, shape index: {}]
  %s3 = inlined_call_operand.hbm [shape: f32[8,128], index: 3, kind: output, shape index: {0}]
  %s4 = inlined_call_operand.hbm [shape: f32[8,128], index: 4, kind: output, shape index: {1}]
  %5 = xla_tuple %s3, %s4
  %s6 = sld [smem:[#allocation0]]
  $region46: #{tpu_custom_call.1} parent=0
    _
  %s8 = ssub.s32 1, %s6
  %s9 = scalar_select 0, %s8, %s6
  $region1: #{tpu_custom_call.1} parent=0
    #allocation2 [shape = 'u8[8192]{0}', space=vmem, size = 0x2000, scoped, tag = 'input window, operand 0, single buffered']
    #allocation3 [shape = 's32[1]{0}', space=sflag, size = 0x4, scoped, tag = 'scoped memory for tpu_custom_call.1']
    #allocation4 [shape = 's32[1]{0}', space=sflag, size = 0x4, scoped, tag = 'scoped memory for tpu_custom_call.1']
    #allocation5 [shape = 'u8[8192]{0}', space=vmem, size = 0x2000, scoped, tag = 'input window, operand 1, single buffered']
    #allocation6 [shape = 's32[1]{0}', space=sflag, size = 0x4, scoped, tag = 'scoped memory for tpu_custom_call.1']
    #allocation7 [shape = 'u8[8192]{0}', space=vmem, size = 0x2000, scoped, tag = 'input window, operand 2, single buffered']
    #allocation8 [shape = 'u8[4096]{0}', space=vmem, size = 0x1000, scoped, tag = 'output window, operand 0, single buffered']
    #allocation9 [shape = 'u8[4096]{0}', space=vmem, size = 0x1000, scoped, tag = 'output window, operand 1, single buffered']
    #allocation10 [shape = 's32[1]{0}', space=sflag, size = 0x4, scoped, tag = 'scoped memory for tpu_custom_call.1']
    %10 = vsyncpa [#allocation3], 0
    %11 = vsyncpa [#allocation6], 0
    %12 = vsyncpa [#allocation4], 0
    %13 = vsyncpa [#allocation10], 0
    // Predicated region
    $region2: #{tpu_custom_call.1} parent=1 // pred_check
      _
    $region3: #{tpu_custom_call.1} parent=1 // pred_check_branch
      %15 = sbr.rel (0) target = $region5
    $region4: #{tpu_custom_call.1} parent=1 // pred_region
      %s16 = sadd.s32 0, 0
      %p17 = scmp.lt.s32.totalorder %s16, 0
      %s18 = scalar_select %p17, %s16, 0
      %s19 = smul.u32 2, %s18
      %s21 = ssub.s32 256, 256
      %22 = vsyncadd [#allocation3], %s21
      %s23 = smul.addr %s19, 128
      %s24 = scalar_lea.hbm %s0, %s23
      %s25 = sshll.u32 [#allocation2], 4
      %s26 = int_to_ptr.vmem [resolvable:$true] %s25
      %31 = dma.hbm_to_vmem [thread:$0]  %s24, 256, %s26, [#allocation3], 128, 128, 8
    $region5: #{tpu_custom_call.1} parent=1 // pred_fallthru
      _
    // Predicated region
    $region6: #{tpu_custom_call.1} parent=1 // pred_check
      _
    $region7: #{tpu_custom_call.1} parent=1 // pred_check_branch
      %33 = sbr.rel (0) target = $region9
    $region8: #{tpu_custom_call.1} parent=1 // pred_region
      %s34 = sadd.s32 0, 0
      %p35 = scmp.lt.s32.totalorder %s34, 0
      %s36 = scalar_select %p35, %s34, 0
      %s37 = smul.u32 2, %s36
      %s39 = ssub.s32 256, 256
      %40 = vsyncadd [#allocation6], %s39
      %s41 = smul.addr %s37, 128
      %s42 = scalar_lea.hbm %s1, %s41
      %s43 = sshll.u32 [#allocation5], 4
      %s44 = int_to_ptr.vmem [resolvable:$true] %s43
      %49 = dma.hbm_to_vmem [thread:$0]  %s42, 256, %s44, [#allocation6], 128, 128, 8
    $region9: #{tpu_custom_call.1} parent=1 // pred_fallthru
      _
    // Predicated region
    $region10: #{tpu_custom_call.1} parent=1 // pred_check
      _
    $region11: #{tpu_custom_call.1} parent=1 // pred_check_branch
      %51 = sbr.rel (0) target = $region13
    $region12: #{tpu_custom_call.1} parent=1 // pred_region
      %s52 = sadd.s32 0, 0
      %p53 = scmp.lt.s32.totalorder %s52, 0
      %s54 = scalar_select %p53, %s52, 0
      %s55 = smul.u32 2, %s54
      %s57 = ssub.s32 256, 256
      %58 = vsyncadd [#allocation6], %s57
      %s59 = smul.addr %s55, 128
      %s60 = scalar_lea.hbm %s2, %s59
      %s61 = sshll.u32 [#allocation7], 4
      %s62 = int_to_ptr.vmem [resolvable:$true] %s61
      %67 = dma.hbm_to_vmem [thread:$0]  %s60, 256, %s62, [#allocation6], 128, 128, 8
    $region13: #{tpu_custom_call.1} parent=1 // pred_fallthru
      _
    // Predicated region
    $region14: #{tpu_custom_call.1} parent=1 // pred_check
      _
    $region15: #{tpu_custom_call.1} parent=1 // pred_check_branch
      %69 = sbr.rel (0) target = $region17
    $region16: #{tpu_custom_call.1} parent=1 // pred_region
      %70 = dma.done [#allocation3], 256
    $region17: #{tpu_custom_call.1} parent=1 // pred_fallthru
      _
    // Predicated region
    $region18: #{tpu_custom_call.1} parent=1 // pred_check
      _
    $region19: #{tpu_custom_call.1} parent=1 // pred_check_branch
      %72 = sbr.rel (0) target = $region21
    $region20: #{tpu_custom_call.1} parent=1 // pred_region
      %73 = dma.done [#allocation6], 256
    $region21: #{tpu_custom_call.1} parent=1 // pred_fallthru
      _
    // Predicated region
    $region22: #{tpu_custom_call.1} parent=1 // pred_check
      _
    $region23: #{tpu_custom_call.1} parent=1 // pred_check_branch
      %75 = sbr.rel (0) target = $region25
    $region24: #{tpu_custom_call.1} parent=1 // pred_region
      %76 = dma.done [#allocation6], 256
    $region25: #{tpu_custom_call.1} parent=1 // pred_fallthru
      _
    %s77 = sadd.s32 0, 0
    %p78 = scmp.lt.s32.totalorder %s77, 0
    %s79 = scalar_select %p78, %s77, 0
    %s80 = smul.u32 2, %s79
    %s81 = sadd.s32 0, 0
    %p82 = scmp.lt.s32.totalorder %s81, 0
    %s83 = scalar_select %p82, %s81, 0
    %s84 = smul.u32 2, %s83
    %s85 = sadd.s32 0, 0
    %p86 = scmp.lt.s32.totalorder %s85, 0
    %s87 = scalar_select %p86, %s85, 0
    %s88 = smul.u32 2, %s87
    %p89 = scmp.eq.s32.totalorder 0, 0
    // Predicated region
    $region26: #{tpu_custom_call.1} parent=1 // pred_check
      %p90 = pneg %p89
    $region27: #{tpu_custom_call.1} parent=1 // pred_check_branch
      %92 = sbr.rel (%p90) target = $region29
    $region28: #{tpu_custom_call.1} parent=1 // pred_region
      %93 = vst [vmem:[#allocation8] sm:$0xff] 0.0
      %94 = vst [vmem:[#allocation9] sm:$0xff] 0.0
    $region29: #{tpu_custom_call.1} parent=1 // pred_fallthru
      _
    %v95 = vld [vmem:[#allocation2] sm:$0xff]
    %v96 = vld [vmem:[#allocation2 + $0x8] sm:$0xff]
    %v97 = vld [vmem:[#allocation5] sm:$0xff]
    %v98 = vld [vmem:[#allocation5 + $0x8] sm:$0xff]
    %v99 = vld [vmem:[#allocation7] sm:$0xff]
    %v100 = vld [vmem:[#allocation7 + $0x8] sm:$0xff]
    %v101 = vsub.f32 1.0, %v99
    %v102 = vsub.f32 1.0, %v100
    %v103 = vsub.f32 %v95, %v97
    %v104 = vsub.f32 %v96, %v98
    %v105 = vmul.f32 %v103, %v101
    %v106 = vmul.f32 %v104, %v102
    %v107 = vmul.f32 %v105, %v105
    %v108 = vmul.f32 %v106, %v106
    %v109 = vld [vmem:[#allocation8] sm:$0xff]
    %v110 = vadd.f32 %v107, %v108
    %v111 = vadd.f32 %v109, %v110
    %112 = vst [vmem:[#allocation8] sm:$0xff] %v111
    %v113 = vld [vmem:[#allocation9] sm:$0xff]
    %v114 = vadd.f32 %v101, %v102
    %v115 = vadd.f32 %v113, %v114
    %116 = vst [vmem:[#allocation9] sm:$0xff] %v115
    // Predicated region
    $region30: #{tpu_custom_call.1} parent=1 // pred_check
      _
    $region31: #{tpu_custom_call.1} parent=1 // pred_check_branch
      %118 = sbr.rel (0) target = $region33
    $region32: #{tpu_custom_call.1} parent=1 // pred_region
      %s120 = ssub.s32 128, 128
      %121 = vsyncadd [#allocation4], %s120
      %s123 = sshll.u32 [#allocation8], 4
      %s124 = int_to_ptr.vmem [resolvable:$true] %s123
      %126 = dma.vmem_to_hbm [thread:$0]  %s124, 128, %s3, [#allocation4]
    $region33: #{tpu_custom_call.1} parent=1 // pred_fallthru
      _
    // Predicated region
    $region34: #{tpu_custom_call.1} parent=1 // pred_check
      _
    $region35: #{tpu_custom_call.1} parent=1 // pred_check_branch
      %128 = sbr.rel (0) target = $region37
    $region36: #{tpu_custom_call.1} parent=1 // pred_region
      %s130 = ssub.s32 128, 128
      %131 = vsyncadd [#allocation10], %s130
      %s133 = sshll.u32 [#allocation9], 4
      %s134 = int_to_ptr.vmem [resolvable:$true] %s133
      %136 = dma.vmem_to_hbm [thread:$0]  %s134, 128, %s4, [#allocation10]
    $region37: #{tpu_custom_call.1} parent=1 // pred_fallthru
      _
    // Predicated region
    $region38: #{tpu_custom_call.1} parent=1 // pred_check
      _
    $region39: #{tpu_custom_call.1} parent=1 // pred_check_branch
      %138 = sbr.rel (0) target = $region41
    $region40: #{tpu_custom_call.1} parent=1 // pred_region
      %139 = dma.done [#allocation4], 128
    $region41: #{tpu_custom_call.1} parent=1 // pred_fallthru
      _
    // Predicated region
    $region42: #{tpu_custom_call.1} parent=1 // pred_check
      _
    $region43: #{tpu_custom_call.1} parent=1 // pred_check_branch
      %141 = sbr.rel (0) target = $region45
    $region44: #{tpu_custom_call.1} parent=1 // pred_region
      %142 = dma.done [#allocation10], 128
    $region45: #{tpu_custom_call.1} parent=1 // pred_fallthru
      _
    %143 = vsyncpa [#allocation3], 1
    %144 = vsyncpa [#allocation6], 1
    %145 = vsyncpa [#allocation4], 1
    %146 = vsyncpa [#allocation10], 1

</llo_original>
